<compile_context>
chip_gen: v7x
topology: tpu7x:2x2x1
jax: 0.10.0
libtpu: 0.0.40
codegen_flags: <defaults>
</compile_context>

<pallas_src>
import functools

import jax
import jax.numpy as jnp
from jax import lax
from jax.experimental import pallas as pl
from jax.experimental.pallas import tpu as pltpu


_VMEM_LIMIT_BYTES = 32 * 1024 * 1024   # explicit: raises v5e's 16 MiB default,
                                       # equals v6e/v7x default scoped limit.
_F32_TINY = float(jnp.finfo(jnp.float32).tiny)


def _origin_mask():
    """(1, 8, 128) bool mask that is True only at [0, 0, 0]."""
    r = lax.broadcasted_iota(jnp.int32, (1, 8, 128), 1)
    c = lax.broadcasted_iota(jnp.int32, (1, 8, 128), 2)
    return jnp.logical_and(r == 0, c == 0)


# ----------------------------------------------------------------------------
# Kernel 1: per-pixel gt-class probability (pixels on the lane axis) plus
# per-tile counts of valid pixels and of pixels with prob <= thresh.
# ----------------------------------------------------------------------------
def _pixel_stats_kernel(logits_ref, target_ref, prob_ref, cnt_le_ref,
                        cnt_valid_ref, *, ignore_index, thresh, hw, tile):
    x = logits_ref[...].astype(jnp.float32)          # (B, C, T) pixels on lanes
    tgt = target_ref[...]                            # (B, T) int32
    valid = tgt != ignore_index                      # (B, T) bool
    tgt_c = jnp.where(valid, tgt, 0)                 # torch: target * valid

    m = jnp.max(x, axis=1)                           # (B, T) sublane reduce
    e = jnp.exp(x - m[:, None, :])                   # (B, C, T)
    lse = m + jnp.log(jnp.sum(e, axis=1))            # (B, T)

    # gt-class logit via a one-hot select against a tiny (1, C, 1) iota.
    cls = lax.broadcasted_iota(jnp.int32, (1, x.shape[1], 1), 1)
    onehot = cls == tgt_c[:, None, :]                # (B, C, T) via broadcast
    gt_logit = jnp.sum(jnp.where(onehot, x, 0.0), axis=1)     # (B, T)

    # prob = softmax prob of the gt class = exp(-nll); one EUP exp per pixel.
    prob_gt = jnp.exp(gt_logit - lse)                # (B, T)

    # Invalid pixels: prob = 2.0 (never kept since any effective thr <= 1.5).
    prob_out = jnp.where(valid, prob_gt, 2.0)
    prob_ref[...] = prob_out

    # Per-tile counts.  Mask the padded columns of a ragged final block so the
    # garbage they compute never enters the counts.
    if hw % tile != 0:  # static
        col = (pl.program_id(0) * tile
               + lax.broadcasted_iota(jnp.int32, valid.shape, 1))
        valid = jnp.logical_and(valid, col < hw)
    keep_thr = jnp.logical_and(valid, prob_out <= jnp.float32(thresh))

    n_valid = jnp.sum(valid.astype(jnp.int32))
    n_le = jnp.sum(keep_thr.astype(jnp.int32))

    origin = _origin_mask()
    cnt_le_ref[...] = jnp.where(origin, n_le, 0)
    cnt_valid_ref[...] = jnp.where(origin, n_valid, 0)


def _pixel_stats(logits_bcp, target_bp, ignore_index, thresh, tile):
    b, c, hw = logits_bcp.shape
    g = pl.cdiv(hw, tile)
    kern = functools.partial(_pixel_stats_kernel, ignore_index=ignore_index,
                             thresh=float(thresh), hw=hw, tile=tile)
    return pl.pallas_call(
        kern,
        out_shape=(jax.ShapeDtypeStruct((b, hw), jnp.float32),
                   jax.ShapeDtypeStruct((g, 8, 128), jnp.int32),
                   jax.ShapeDtypeStruct((g, 8, 128), jnp.int32)),
        grid_spec=pltpu.PrefetchScalarGridSpec(
            num_scalar_prefetch=0,
            grid=(g,),
            in_specs=[pl.BlockSpec((b, c, tile), lambda i: (0, 0, i)),
                      pl.BlockSpec((b, tile), lambda i: (0, i))],
            out_specs=[pl.BlockSpec((b, tile), lambda i: (0, i)),
                       pl.BlockSpec((1, 8, 128), lambda i: (i, 0, 0)),
                       pl.BlockSpec((1, 8, 128), lambda i: (i, 0, 0))]),
        compiler_params=pltpu.CompilerParams(
            dimension_semantics=("parallel",),
            vmem_limit_bytes=_VMEM_LIMIT_BYTES),
    )(logits_bcp, target_bp)


# ----------------------------------------------------------------------------
# Kernel 2: masked loss-sum / kept-pixel-count, per-tile partials (parallel).
# nll is recomputed in-kernel as -log(prob) (EUP log, prob stays f32).
# ----------------------------------------------------------------------------
def _ohem_reduce_kernel(thr_ref, prob_ref, psum_ref, pcnt_ref, *, hw, tile):
    prob = prob_ref[...]                              # (B, T) f32
    keep = prob <= thr_ref[0]                         # invalid (2.0) never kept
    if hw % tile != 0:  # static: mask the ragged final block's padded columns
        col = (pl.program_id(0) * tile
               + lax.broadcasted_iota(jnp.int32, prob.shape, 1))
        keep = jnp.logical_and(keep, col < hw)

    # Recompute nll = -log(prob).  Clamp guards log(0) if prob underflowed
    # (caps nll at ~88 in that extreme case; torch would give the exact value).
    nll = -jnp.log(jnp.maximum(prob, jnp.float32(_F32_TINY)))

    s = jnp.sum(jnp.where(keep, nll, 0.0))
    n = jnp.sum(keep.astype(jnp.float32))

    origin = _origin_mask()
    psum_ref[...] = jnp.where(origin, s, 0.0)
    pcnt_ref[...] = jnp.where(origin, n, 0.0)


def _ohem_reduce(thr, prob, tile):
    b, hw = prob.shape
    g = pl.cdiv(hw, tile)
    kern = functools.partial(_ohem_reduce_kernel, hw=hw, tile=tile)
    return pl.pallas_call(
        kern,
        out_shape=(jax.ShapeDtypeStruct((g, 8, 128), jnp.float32),
                   jax.ShapeDtypeStruct((g, 8, 128), jnp.float32)),
        grid_spec=pltpu.PrefetchScalarGridSpec(
            num_scalar_prefetch=0,
            grid=(g,),
            in_specs=[pl.BlockSpec(memory_space=pltpu.MemorySpace.SMEM),
                      pl.BlockSpec((b, tile), lambda i: (0, i))],
            out_specs=[pl.BlockSpec((1, 8, 128), lambda i: (i, 0, 0)),
                       pl.BlockSpec((1, 8, 128), lambda i: (i, 0, 0))]),
        compiler_params=pltpu.CompilerParams(
            dimension_semantics=("parallel",),
            vmem_limit_bytes=_VMEM_LIMIT_BYTES),
    )(thr, prob)


# ----------------------------------------------------------------------------
# Tile selection: ~24 MiB estimated stage-1 VMEM footprint per step
# (double-buffered logits/target/prob + ~2 block-sized f32 temporaries),
# leaving headroom under the 32 MiB scoped limit set above.
# ----------------------------------------------------------------------------
def _pick_tile(hw, b, c):
    per_pixel = 4 * b * (4 * c + 7)           # bytes of VMEM per pixel (est.)
    budget = 24 * 1024 * 1024
    tile = budget // max(per_pixel, 1)
    tile = max(128, (tile // 128) * 128)
    tile = min(tile, 128 * 1024)
    if tile >= hw:
        return hw                              # single full-width block
    return tile


# ----------------------------------------------------------------------------
# OhemCrossEntropy2dTensor.forward
# ----------------------------------------------------------------------------
def ohem_cross_entropy(pred_nchw, target_bhw, *, ignore_index=255,
                       thresh=0.7, min_kept=256):
    b, c, h, w = pred_nchw.shape
    hw = h * w
    N = b * hw

    # Free reshape (no NHWC transpose copy); bf16 logits pass through as-is.
    logits = pred_nchw.reshape(b, c, hw)
    tgt = target_bhw.reshape(b, hw).astype(jnp.int32)

    tile = _pick_tile(hw, b, c)
    prob_gt, cnt_le_p, cnt_valid_p = _pixel_stats(logits, tgt, ignore_index,
                                                  thresh, tile)
    num_valid = jnp.sum(cnt_valid_p)          # int32, exact
    cnt_le = jnp.sum(cnt_le_p)                # valid pixels with prob <= thresh

    # torch: if min_kept > num_valid: pass; elif num_valid > 0: apply OHEM
    apply_ohem = jnp.logical_and(num_valid >= min_kept, num_valid > 0)

    if min_kept > 0:
        k = min(N, int(min_kept))

        def _kth_smallest(p):
            # Only reached when fewer than k probs are <= thresh (rare path).
            neg_topk, _ = lax.top_k(-p.reshape(-1), k)
            return -neg_topk[k - 1]

        # Common case: at least k probs are <= thresh, so the k-th smallest is
        # <= thresh and the threshold collapses to thresh -> skip top_k.
        need_topk = jnp.logical_and(apply_ohem, cnt_le < k)
        kth = lax.cond(need_topk, _kth_smallest,
                       lambda p: jnp.float32(thresh), prob_gt)
        threshold = jnp.maximum(kth, jnp.float32(thresh))
        # 1.5 keeps every valid pixel (prob <= 1.0) and no invalid one (2.0).
        thr_eff = jnp.where(apply_ohem, threshold, jnp.float32(1.5))
    else:
        # torch skips the kept-mask entirely when min_kept == 0
        thr_eff = jnp.float32(1.5)

    thr = jnp.full((1,), thr_eff, jnp.float32)
    psum_p, pcnt_p = _ohem_reduce(thr, prob_gt, tile)
    loss_sum = jnp.sum(psum_p)
    cnt = jnp.sum(pcnt_p)
    # CrossEntropyLoss(reduction='mean', ignore_index=...) over kept pixels.
    # NOTE: cnt == 0 (all pixels ignored) yields NaN, same as torch.
    return loss_sum / cnt


# ----------------------------------------------------------------------------
# CriterionOhem.forward
# ----------------------------------------------------------------------------
def criterion_ohem(preds, target, *, aux_weight, thresh=0.7, min_kept=100000,
                   ignore_index=255, use_weight=False):
    # TODO(synk): use_weight=True path (class weights [0.2, 2.0]) not implemented;
    #             default use_weight=False matches the reference construction here.
    del use_weight
    h, w = target.shape[1], target.shape[2]
    if aux_weight > 0:
        main_pred, aux_pred = preds
        assert main_pred.shape[2:] == (h, w) and aux_pred.shape[2:] == (h, w)
        loss1 = ohem_cross_entropy(main_pred, target, ignore_index=ignore_index,
                                   thresh=thresh, min_kept=min_kept)
        loss2 = ohem_cross_entropy(aux_pred, target, ignore_index=ignore_index,
                                   thresh=thresh, min_kept=min_kept)
        return loss1 + aux_weight * loss2
    else:
        pred = preds[0]
        assert pred.shape[2:] == (h, w)
        return ohem_cross_entropy(pred, target, ignore_index=ignore_index,
                                  thresh=thresh, min_kept=min_kept)


# ----------------------------------------------------------------------------
# Pure-JAX reference (mirrors the torch module) for a sanity check
# ----------------------------------------------------------------------------
def _ohem_ce_ref(pred, target, ignore_index, thresh, min_kept):
    b, c, h, w = pred.shape
    N = b * h * w
    logits = jnp.transpose(pred, (0, 2, 3, 1)).reshape(N, c).astype(jnp.float32)
    tgt = target.reshape(N).astype(jnp.int32)
    valid = tgt != ignore_index
    tgt_c = jnp.where(valid, tgt, 0)
    logp = jax.nn.log_softmax(logits, axis=-1)
    nll = -jnp.take_along_axis(logp, tgt_c[:, None], axis=-1)[:, 0]
    prob_gt = jnp.where(valid, jnp.exp(-nll), 1.0)
    num_valid = jnp.sum(valid)
    apply_ohem = jnp.logical_and(num_valid >= min_kept, num_valid > 0)
    if min_kept > 0:
        kth = jnp.sort(prob_gt)[min(N, int(min_kept)) - 1]
        threshold = jnp.maximum(kth, jnp.float32(thresh))
        kept = prob_gt <= threshold
    else:
        kept = jnp.ones_like(valid)
        apply_ohem = jnp.zeros((), jnp.bool_)
    mask = jnp.logical_and(valid, jnp.where(apply_ohem, kept, True))
    mf = mask.astype(jnp.float32)
    return jnp.sum(nll * mf) / jnp.sum(mf)


if __name__ == "__main__":
    key = jax.random.PRNGKey(0)
    b, c, h, w = 2, 4, 16, 16
    ignore_index = 255
    aux_weight = 0.4

    k1, k2, k3, k4 = jax.random.split(key, 4)
    main_pred = jax.random.normal(k1, (b, c, h, w), jnp.float32)
    aux_pred = jax.random.normal(k2, (b, c, h, w), jnp.float32)
    target = jax.random.randint(k3, (b, h, w), 0, c).astype(jnp.int32)
    ign = jax.random.bernoulli(k4, 0.1, (b, h, w))
    target = jnp.where(ign, ignore_index, target)

    # Case 1: common fast path (many probs <= thresh -> top_k skipped).
    loss = criterion_ohem((main_pred, aux_pred), target,
                          aux_weight=aux_weight, thresh=0.7,
                          min_kept=64, ignore_index=ignore_index)
    loss = jax.block_until_ready(loss)
    ref = (_ohem_ce_ref(main_pred, target, ignore_index, 0.7, 64)
           + aux_weight * _ohem_ce_ref(aux_pred, target, ignore_index, 0.7, 64))
    assert jnp.isfinite(loss), loss
    assert jnp.allclose(loss, ref, rtol=1e-4, atol=1e-5), (loss, ref)

    # Case 2: slow path (tiny thresh -> k-th smallest prob via lax.top_k).
    loss2 = ohem_cross_entropy(main_pred, target, ignore_index=ignore_index,
                               thresh=0.01, min_kept=32)
    loss2 = jax.block_until_ready(loss2)
    ref2 = _ohem_ce_ref(main_pred, target, ignore_index, 0.01, 32)
    assert jnp.allclose(loss2, ref2, rtol=1e-4, atol=1e-5), (loss2, ref2)

    # Case 3: min_kept > num_valid -> plain mean CE over valid pixels.
    loss3 = ohem_cross_entropy(main_pred, target, ignore_index=ignore_index,
                               thresh=0.7, min_kept=10**6)
    loss3 = jax.block_until_ready(loss3)
    ref3 = _ohem_ce_ref(main_pred, target, ignore_index, 0.7, 10**6)
    assert jnp.allclose(loss3, ref3, rtol=1e-4, atol=1e-5), (loss3, ref3)

    print("KERNEL_OK")
</pallas_src>

<mosaic_0001>
module attributes {stable_mosaic.version = 11 : i64} {
  func.func @_pixel_stats_kernel(%arg0: i32, %arg1: memref<2x4x256xf32, #tpu.memory_space<vmem>>, %arg2: memref<2x256xi32, #tpu.memory_space<vmem>>, %arg3: memref<2x256xf32, #tpu.memory_space<vmem>>, %arg4: memref<1x8x128xi32, #tpu.memory_space<vmem>>, %arg5: memref<1x8x128xi32, #tpu.memory_space<vmem>>) attributes {dimension_semantics = [#tpu.dimension_semantics<parallel>], iteration_bounds = array<i64: 1>, scalar_prefetch = 0 : i64, scratch_operands = 0 : i64, tpu.core_type = #tpu.core_type<tc>, window_params = [{transform_indices = @transform_0, window_bounds = array<i64: 2, 4, 256>}, {transform_indices = @transform_1, window_bounds = array<i64: 2, 256>}, {transform_indices = @transform_2, window_bounds = array<i64: 2, 256>}, {transform_indices = @transform_3, window_bounds = array<i64: 1, 8, 128>}, {transform_indices = @transform_4, window_bounds = array<i64: 1, 8, 128>}]} {
    %c0 = arith.constant 0 : index
    %c0_0 = arith.constant 0 : index
    %c0_1 = arith.constant 0 : index
    %0 = vector.load %arg1[%c0, %c0_0, %c0_1] : memref<2x4x256xf32, #tpu.memory_space<vmem>>, vector<2x4x256xf32>
    %c0_2 = arith.constant 0 : index
    %c0_3 = arith.constant 0 : index
    %1 = vector.load %arg2[%c0_2, %c0_3] : memref<2x256xi32, #tpu.memory_space<vmem>>, vector<2x256xi32>
    %c255_i32 = arith.constant 255 : i32
    %2 = vector.broadcast %c255_i32 : i32 to vector<2x256xi32>
    %3 = arith.cmpi ne, %1, %2 : vector<2x256xi32>
    %c0_i32 = arith.constant 0 : i32
    %4 = vector.broadcast %c0_i32 : i32 to vector<2x256xi32>
    %5 = arith.select %3, %1, %4 : vector<2x256xi1>, vector<2x256xi32>
    %cst = arith.constant dense<0xFF800000> : vector<2x256xf32>
    %6 = vector.multi_reduction <maximumf>, %0, %cst [1] : vector<2x4x256xf32> to vector<2x256xf32>
    %7 = vector.shape_cast %6 : vector<2x256xf32> to vector<2x1x256xf32>
    %8 = vector.broadcast %7 : vector<2x1x256xf32> to vector<2x4x256xf32>
    %9 = arith.subf %0, %8 : vector<2x4x256xf32>
    %10 = math.exp %9 : vector<2x4x256xf32>
    %cst_4 = arith.constant dense<0.000000e+00> : vector<2x256xf32>
    %11 = vector.multi_reduction <add>, %10, %cst_4 [1] : vector<2x4x256xf32> to vector<2x256xf32>
    %12 = math.log %11 : vector<2x256xf32>
    %13 = arith.addf %6, %12 : vector<2x256xf32>
    %14 = tpu.iota {dimensions = array<i32: 1>} : vector<1x4x1xi32>
    %15 = vector.shape_cast %5 : vector<2x256xi32> to vector<2x1x256xi32>
    %16 = vector.broadcast %14 : vector<1x4x1xi32> to vector<2x4x256xi32>
    %17 = vector.broadcast %15 : vector<2x1x256xi32> to vector<2x4x256xi32>
    %18 = arith.cmpi eq, %16, %17 : vector<2x4x256xi32>
    %cst_5 = arith.constant 0.000000e+00 : f32
    %19 = vector.broadcast %cst_5 : f32 to vector<2x4x256xf32>
    %20 = arith.select %18, %0, %19 : vector<2x4x256xi1>, vector<2x4x256xf32>
    %cst_6 = arith.constant dense<0.000000e+00> : vector<2x256xf32>
    %21 = vector.multi_reduction <add>, %20, %cst_6 [1] : vector<2x4x256xf32> to vector<2x256xf32>
    %22 = arith.subf %21, %13 : vector<2x256xf32>
    %23 = math.exp %22 : vector<2x256xf32>
    %cst_7 = arith.constant 2.000000e+00 : f32
    %24 = vector.broadcast %cst_7 : f32 to vector<2x256xf32>
    %25 = arith.select %3, %23, %24 : vector<2x256xi1>, vector<2x256xf32>
    %c0_8 = arith.constant 0 : index
    %c0_9 = arith.constant 0 : index
    %26 = vector.load %arg3[%c0_8, %c0_9] : memref<2x256xf32, #tpu.memory_space<vmem>>, vector<2x256xf32>
    tpu.vector_store %arg3[%c0_8, %c0_9], %25 {strides = array<i32>} : memref<2x256xf32, #tpu.memory_space<vmem>>, vector<2x256xf32>,
    %cst_10 = arith.constant 0.699999988 : f32
    %27 = vector.broadcast %cst_10 : f32 to vector<2x256xf32>
    %28 = arith.cmpf ole, %25, %27 : vector<2x256xf32>
    %29 = arith.andi %3, %28 : vector<2x256xi1>
    %30 = arith.extui %3 : vector<2x256xi1> to vector<2x256xi32>
    %31 = vector.shape_cast %30 : vector<2x256xi32> to vector<1x2x256xi32>
    %cst_11 = arith.constant dense<0> : vector<1xi32>
    %32 = vector.multi_reduction <add>, %31, %cst_11 [1, 2] : vector<1x2x256xi32> to vector<1xi32>
    %33 = vector.shape_cast %32 : vector<1xi32> to vector<1x1x1xi32>
    %34 = vector.extract %33[0, 0, 0] : i32 from vector<1x1x1xi32>
    %35 = arith.extui %29 : vector<2x256xi1> to vector<2x256xi32>
    %36 = vector.shape_cast %35 : vector<2x256xi32> to vector<1x2x256xi32>
    %cst_12 = arith.constant dense<0> : vector<1xi32>
    %37 = vector.multi_reduction <add>, %36, %cst_12 [1, 2] : vector<1x2x256xi32> to vector<1xi32>
    %38 = vector.shape_cast %37 : vector<1xi32> to vector<1x1x1xi32>
    %39 = vector.extract %38[0, 0, 0] : i32 from vector<1x1x1xi32>
    %40 = tpu.iota {dimensions = array<i32: 1>} : vector<1x8x128xi32>
    %41 = tpu.iota {dimensions = array<i32: 2>} : vector<1x8x128xi32>
    %c0_i32_13 = arith.constant 0 : i32
    %42 = vector.broadcast %c0_i32_13 : i32 to vector<1x8x128xi32>
    %43 = arith.cmpi eq, %40, %42 : vector<1x8x128xi32>
    %c0_i32_14 = arith.constant 0 : i32
    %44 = vector.broadcast %c0_i32_14 : i32 to vector<1x8x128xi32>
    %45 = arith.cmpi eq, %41, %44 : vector<1x8x128xi32>
    %46 = arith.andi %43, %45 : vector<1x8x128xi1>
    %c0_i32_15 = arith.constant 0 : i32
    %47 = vector.broadcast %39 : i32 to vector<1x8x128xi32>
    %48 = vector.broadcast %c0_i32_15 : i32 to vector<1x8x128xi32>
    %49 = arith.select %46, %47, %48 : vector<1x8x128xi1>, vector<1x8x128xi32>
    %c0_16 = arith.constant 0 : index
    %c0_17 = arith.constant 0 : index
    %c0_18 = arith.constant 0 : index
    %50 = vector.load %arg4[%c0_16, %c0_17, %c0_18] : memref<1x8x128xi32, #tpu.memory_space<vmem>>, vector<1x8x128xi32>
    tpu.vector_store %arg4[%c0_16, %c0_17, %c0_18], %49 {strides = array<i32>} : memref<1x8x128xi32, #tpu.memory_space<vmem>>, vector<1x8x128xi32>,
    %c0_i32_19 = arith.constant 0 : i32
    %51 = vector.broadcast %34 : i32 to vector<1x8x128xi32>
    %52 = vector.broadcast %c0_i32_19 : i32 to vector<1x8x128xi32>
    %53 = arith.select %46, %51, %52 : vector<1x8x128xi1>, vector<1x8x128xi32>
    %c0_20 = arith.constant 0 : index
    %c0_21 = arith.constant 0 : index
    %c0_22 = arith.constant 0 : index
    %54 = vector.load %arg5[%c0_20, %c0_21, %c0_22] : memref<1x8x128xi32, #tpu.memory_space<vmem>>, vector<1x8x128xi32>
    tpu.vector_store %arg5[%c0_20, %c0_21, %c0_22], %53 {strides = array<i32>} : memref<1x8x128xi32, #tpu.memory_space<vmem>>, vector<1x8x128xi32>,
    return
  }
  func.func @transform_0(%arg0: i32) -> (i32, i32, i32) {
    %c0_i32 = arith.constant 0 : i32
    %c0_i32_0 = arith.constant 0 : i32
    %c0_i32_1 = arith.constant 0 : i32
    return %c0_i32, %c0_i32_0, %arg0 : i32, i32, i32
  }
  func.func @transform_1(%arg0: i32) -> (i32, i32) {
    %c0_i32 = arith.constant 0 : i32
    %c0_i32_0 = arith.constant 0 : i32
    return %c0_i32, %arg0 : i32, i32
  }
  func.func @transform_2(%arg0: i32) -> (i32, i32) {
    %c0_i32 = arith.constant 0 : i32
    %c0_i32_0 = arith.constant 0 : i32
    return %c0_i32, %arg0 : i32, i32
  }
  func.func @transform_3(%arg0: i32) -> (i32, i32, i32) {
    %c0_i32 = arith.constant 0 : i32
    %c0_i32_0 = arith.constant 0 : i32
    %c0_i32_1 = arith.constant 0 : i32
    return %arg0, %c0_i32, %c0_i32_0 : i32, i32, i32
  }
  func.func @transform_4(%arg0: i32) -> (i32, i32, i32) {
    %c0_i32 = arith.constant 0 : i32
    %c0_i32_0 = arith.constant 0 : i32
    %c0_i32_1 = arith.constant 0 : i32
    return %arg0, %c0_i32, %c0_i32_0 : i32, i32, i32
  }
}

</mosaic_0001>

<llo_original>
// kernel: tpu_custom_call.1
$region0: #{tpu_custom_call.1}
  #allocation0 [shape = 'u32[]', space=smem, size = 0x4, offset = 0x4, fixed_abs, tag = 'smem constant byte address 0x4 - core index']
  #allocation1 [shape = 'u32[144,128]{1,0:T(1,128)}', space=vmem, size = 0x12000, scoped, tag = 'internal scratch']
  %s0 = inlined_call_operand.hbm [shape: f32[2,4,256], index: 0, kind: input, shape index: {}]
  %s1 = inlined_call_operand.hbm [shape: s32[2,256], index: 1, kind: input, shape index: {}]
  %s2 = inlined_call_operand.hbm [shape: f32[2,256], index: 2, kind: output, shape index: {0}]
  %s3 = inlined_call_operand.hbm [shape: s32[1,8,128], index: 3, kind: output, shape index: {1}]
  %s4 = inlined_call_operand.hbm [shape: s32[1,8,128], index: 4, kind: output, shape index: {2}]
  %5 = xla_tuple %s2, %s3, %s4
  %s6 = sld [smem:[#allocation0]]
  $region42: #{tpu_custom_call.1} parent=0
    _
  %s8 = ssub.s32 1, %s6
  %s9 = scalar_select 0, %s8, %s6
  $region1: #{tpu_custom_call.1} parent=0
    #allocation2 [shape = 'u8[8192]{0}', space=vmem, size = 0x2000, scoped, tag = 'input window, operand 0, single buffered']
    #allocation3 [shape = 's32[1]{0}', space=sflag, size = 0x4, scoped, tag = 'scoped memory for tpu_custom_call.1']
    #allocation4 [shape = 's32[1]{0}', space=sflag, size = 0x4, scoped, tag = 'scoped memory for tpu_custom_call.1']
    #allocation5 [shape = 'u8[2048]{0}', space=vmem, size = 0x800, scoped, tag = 'input window, operand 1, single buffered']
    #allocation6 [shape = 's32[1]{0}', space=sflag, size = 0x4, scoped, tag = 'scoped memory for tpu_custom_call.1']
    #allocation7 [shape = 'u8[2048]{0}', space=vmem, size = 0x800, scoped, tag = 'output window, operand 0, single buffered']
    #allocation8 [shape = 'u8[4096]{0}', space=vmem, size = 0x1000, scoped, tag = 'output window, operand 1, single buffered']
    #allocation9 [shape = 's32[1]{0}', space=sflag, size = 0x4, scoped, tag = 'scoped memory for tpu_custom_call.1']
    #allocation10 [shape = 'u8[4096]{0}', space=vmem, size = 0x1000, scoped, tag = 'output window, operand 2, single buffered']
    %10 = vsyncpa [#allocation3], 0
    %11 = vsyncpa [#allocation6], 0
    %12 = vsyncpa [#allocation4], 0
    %13 = vsyncpa [#allocation9], 0
    // Predicated region
    $region2: #{tpu_custom_call.1} parent=1 // pred_check
      _
    $region3: #{tpu_custom_call.1} parent=1 // pred_check_branch
      %15 = sbr.rel (0) target = $region5
    $region4: #{tpu_custom_call.1} parent=1 // pred_region
      %s17 = ssub.s32 256, 256
      %18 = vsyncadd [#allocation3], %s17
      %s19 = sshll.u32 [#allocation2], 4
      %s20 = int_to_ptr.vmem [resolvable:$true] %s19
      %25 = dma.hbm_to_vmem [thread:$0]  %s0, 256, %s20, [#allocation3], 128, 128, 8
    $region5: #{tpu_custom_call.1} parent=1 // pred_fallthru
      _
    // Predicated region
    $region6: #{tpu_custom_call.1} parent=1 // pred_check
      _
    $region7: #{tpu_custom_call.1} parent=1 // pred_check_branch
      %27 = sbr.rel (0) target = $region9
    $region8: #{tpu_custom_call.1} parent=1 // pred_region
      %s29 = ssub.s32 64, 64
      %30 = vsyncadd [#allocation6], %s29
      %s32 = sshll.u32 [#allocation5], 4
      %s33 = int_to_ptr.vmem [resolvable:$true] %s32
      %35 = dma.hbm_to_vmem [thread:$0]  %s1, 64, %s33, [#allocation6]
    $region9: #{tpu_custom_call.1} parent=1 // pred_fallthru
      _
    // Predicated region
    $region10: #{tpu_custom_call.1} parent=1 // pred_check
      _
    $region11: #{tpu_custom_call.1} parent=1 // pred_check_branch
      %37 = sbr.rel (0) target = $region13
    $region12: #{tpu_custom_call.1} parent=1 // pred_region
      %38 = dma.done [#allocation3], 256
    $region13: #{tpu_custom_call.1} parent=1 // pred_fallthru
      _
    // Predicated region
    $region14: #{tpu_custom_call.1} parent=1 // pred_check
      _
    $region15: #{tpu_custom_call.1} parent=1 // pred_check_branch
      %40 = sbr.rel (0) target = $region17
    $region16: #{tpu_custom_call.1} parent=1 // pred_region
      %41 = dma.done [#allocation6], 64
    $region17: #{tpu_custom_call.1} parent=1 // pred_fallthru
      _
    %v42 = vld [vmem:[#allocation2] sm:$0xff]
    %v43 = vld [vmem:[#allocation2 + $0x8] sm:$0xff]
    %v44 = vld [vmem:[#allocation5] sm:$0xf]
    %vm45 = vcmp.ne.s32.totalorder %v44, 255
    %v46 = vsel %vm45, %v44, 0
    %v49 = vcombine.high %v42, %v42
    %v50 = vcombine.high %v43, %v43
    %vm53 = vcmask 1043456
    %v54 = vsel %vm53, %v42, -inf
    %v55 = vrot.slane %v54, 4
    %v56 = vmax.f32 %v54, %v55
    %v57 = vrot.slane %v56, 2
    %v58 = vmax.f32 %v56, %v57
    %v59 = vrot.slane %v58, 1
    %v60 = vmax.f32 %v58, %v59
    %v61 = vsel %vm53, %v49, -inf
    %v62 = vrot.slane %v61, 4
    %v63 = vmax.f32 %v61, %v62
    %v64 = vrot.slane %v63, 2
    %v65 = vmax.f32 %v63, %v64
    %v66 = vrot.slane %v65, 1
    %v67 = vmax.f32 %v65, %v66
    %v68 = vsel %vm53, %v43, -inf
    %v69 = vrot.slane %v68, 4
    %v70 = vmax.f32 %v68, %v69
    %v71 = vrot.slane %v70, 2
    %v72 = vmax.f32 %v70, %v71
    %v73 = vrot.slane %v72, 1
    %v74 = vmax.f32 %v72, %v73
    %v75 = vsel %vm53, %v50, -inf
    %v76 = vrot.slane %v75, 4
    %v77 = vmax.f32 %v75, %v76
    %v78 = vrot.slane %v77, 2
    %v79 = vmax.f32 %v77, %v78
    %v80 = vrot.slane %v79, 1
    %v81 = vmax.f32 %v79, %v80
    %v86 = vcombine.low %v60, %v67
    %v87 = vcombine.low %v74, %v81
    %v90 = vsub.f32 %v42, %v86
    %v91 = vsub.f32 %v43, %v87
    %v92 = vmul.f32 %v90, 1.442695
    %v93 = vpow.pop %v92
    %v94 = vmul.f32 %v91, 1.442695
    %v95 = vpow.pop %v94
    %v98 = vcombine.high %v93, %v93
    %v99 = vcombine.high %v95, %v95
    %v102 = vsel %vm53, %v93, 0.0
    %v103 = vrot.slane %v102, 4
    %v104 = vadd.f32 %v102, %v103
    %v105 = vrot.slane %v104, 2
    %v106 = vadd.f32 %v104, %v105
    %v107 = vrot.slane %v106, 1
    %v108 = vadd.f32 %v106, %v107
    %v109 = vsel %vm53, %v98, 0.0
    %v110 = vrot.slane %v109, 4
    %v111 = vadd.f32 %v109, %v110
    %v112 = vrot.slane %v111, 2
    %v113 = vadd.f32 %v111, %v112
    %v114 = vrot.slane %v113, 1
    %v115 = vadd.f32 %v113, %v114
    %v116 = vsel %vm53, %v95, 0.0
    %v117 = vrot.slane %v116, 4
    %v118 = vadd.f32 %v116, %v117
    %v119 = vrot.slane %v118, 2
    %v120 = vadd.f32 %v118, %v119
    %v121 = vrot.slane %v120, 1
    %v122 = vadd.f32 %v120, %v121
    %v123 = vsel %vm53, %v99, 0.0
    %v124 = vrot.slane %v123, 4
    %v125 = vadd.f32 %v123, %v124
    %v126 = vrot.slane %v125, 2
    %v127 = vadd.f32 %v125, %v126
    %v128 = vrot.slane %v127, 1
    %v129 = vadd.f32 %v127, %v128
    %v130 = vlog2.pop %v108
    %v131 = vmul.f32 %v130, 0.6931472
    %v132 = vlog2.pop %v115
    %v133 = vmul.f32 %v132, 0.6931472
    %v134 = vlog2.pop %v122
    %v135 = vmul.f32 %v134, 0.6931472
    %v136 = vlog2.pop %v129
    %v137 = vmul.f32 %v136, 0.6931472
    %v138 = vadd.f32 %v60, %v131
    %v139 = vadd.f32 %v67, %v133
    %v140 = vadd.f32 %v74, %v135
    %v141 = vadd.f32 %v81, %v137
    %v142 = vlaneseq
    %v143 = vshrl.u32 %v142, 7
    %v145 = vunpack.c.l.s4 1966171168
    %v146 = vunpack.c.0.s8 %v145
    %v147 = vlaneseq
    %v148 = vshrl.u32 %v147, 7
    %v149 = vsub.s32 %v146, %v148
    %v150 = vrot.slane %v46, %v149
    %v151 = vcombine.high %v150, %v150
    %v152 = vlaneseq
    %v153 = vshrl.u32 %v152, 7
    %v154 = vsub.s32 0, %v153
    %v155 = vrot.slane %v150, %v154
    %v156 = vlaneseq
    %v157 = vshrl.u32 %v156, 7
    %v158 = vsub.s32 1, %v157
    %v159 = vrot.slane %v150, %v158
    %v160 = vlaneseq
    %v161 = vshrl.u32 %v160, 7
    %v162 = vsub.s32 0, %v161
    %v163 = vrot.slane %v151, %v162
    %v164 = vlaneseq
    %v165 = vshrl.u32 %v164, 7
    %v166 = vsub.s32 1, %v165
    %v167 = vrot.slane %v151, %v166
    %vm168 = vcmp.eq.s32.totalorder %v143, %v155
    %vm169 = vcmp.eq.s32.totalorder %v143, %v159
    %vm170 = vcmp.eq.s32.totalorder %v143, %v163
    %vm171 = vcmp.eq.s32.totalorder %v143, %v167
    %v172 = vsel %vm168, %v42, 0.0
    %v173 = vsel %vm169, %v49, 0.0
    %v174 = vsel %vm170, %v43, 0.0
    %v175 = vsel %vm171, %v50, 0.0
    %v176 = vsel %vm53, %v172, 0.0
    %v177 = vrot.slane %v176, 4
    %v178 = vadd.f32 %v176, %v177
    %v179 = vrot.slane %v178, 2
    %v180 = vadd.f32 %v178, %v179
    %v181 = vrot.slane %v180, 1
    %v182 = vadd.f32 %v180, %v181
    %v183 = vsel %vm53, %v173, 0.0
    %v184 = vrot.slane %v183, 4
    %v185 = vadd.f32 %v183, %v184
    %v186 = vrot.slane %v185, 2
    %v187 = vadd.f32 %v185, %v186
    %v188 = vrot.slane %v187, 1
    %v189 = vadd.f32 %v187, %v188
    %v190 = vsel %vm53, %v174, 0.0
    %v191 = vrot.slane %v190, 4
    %v192 = vadd.f32 %v190, %v191
    %v193 = vrot.slane %v192, 2
    %v194 = vadd.f32 %v192, %v193
    %v195 = vrot.slane %v194, 1
    %v196 = vadd.f32 %v194, %v195
    %v197 = vsel %vm53, %v175, 0.0
    %v198 = vrot.slane %v197, 4
    %v199 = vadd.f32 %v197, %v198
    %v200 = vrot.slane %v199, 2
    %v201 = vadd.f32 %v199, %v200
    %v202 = vrot.slane %v201, 1
    %v203 = vadd.f32 %v201, %v202
    %v204 = vsub.f32 %v182, %v138
    %v205 = vsub.f32 %v189, %v139
    %v206 = vsub.f32 %v196, %v140
    %v207 = vsub.f32 %v203, %v141
    %v208 = vmul.f32 %v204, 1.442695
    %v209 = vpow.pop %v208
    %v210 = vmul.f32 %v205, 1.442695
    %v211 = vpow.pop %v210
    %v212 = vmul.f32 %v206, 1.442695
    %v213 = vpow.pop %v212
    %v214 = vmul.f32 %v207, 1.442695
    %v215 = vpow.pop %v214
    %v220 = vcombine.low %v209, %v211
    %v222 = vunpack.c.l.s4 1983009808
    %v223 = vunpack.c.0.s8 %v222
    %v224 = vlaneseq
    %v225 = vshrl.u32 %v224, 7
    %v226 = vsub.s32 %v223, %v225
    %v227 = vrot.slane %v220, %v226
    %v228 = vcombine.low %v213, %v215
    %v230 = vunpack.c.l.s4 1983009808
    %v231 = vunpack.c.0.s8 %v230
    %v232 = vlaneseq
    %v233 = vshrl.u32 %v232, 7
    %v234 = vsub.s32 %v231, %v233
    %v235 = vrot.slane %v228, %v234
    %vm236 = vcmask 1044484
    %v237 = vsel %vm236, %v227, %v227
    %vm238 = vcmask 1046534
    %v239 = vsel %vm238, %v227, %v237
    %v240 = vrot.slane %v235, 7
    %vm241 = vcmask 1041409
    %v242 = vsel %vm241, %v240, %v239
    %vm243 = vcmask 1043459
    %v244 = vsel %vm243, %v240, %v242
    %vm245 = vcmask 1045509
    %v246 = vsel %vm245, %v240, %v244
    %vm247 = vcmask 1047559
    %v248 = vsel %vm247, %v240, %v246
    %v250 = vsel %vm45, %v248, 2.0
    %251 = vst [vmem:[#allocation7] sm:$0xf] %v250
    %vm252 = vcmp.le.f32.partialorder %v250, 0.7
    %vm253 = vmand %vm45, %vm252
    %v254 = vsel %vm45, 1, 0
    %v256 = vunpack.c.l.s4 1983009808
    %v257 = vunpack.c.0.s8 %v256
    %v258 = vlaneseq
    %v259 = vshrl.u32 %v258, 7
    %v260 = vsub.s32 %v257, %v259
    %v261 = vrot.slane %v254, %v260
    %v262 = vcombine.high %v261, %v261
    %vm263 = vcmask 1041408
    %v264 = vsel %vm263, %v261, 0
    %v265 = vsel %vm263, %v262, 0
    %v266 = vadd.s32 %v264, %v265
    %v267 = vand.u32 %v266, 65535
    %v268 = vshrl.u32 %v266, 16
    %v269 = vcvt.s32.f32 %v267
    %v270 = vcvt.s32.f32 %v268
    %271 = vadd.xlane.f32.xlu0 %v269
    %v272 = vpop.xlane.xlu0 %271
    %273 = vadd.xlane.f32.xlu0 %v270
    %v274 = vpop.xlane.xlu0 %273
    %v275 = vcvt.f32.s32 %v272
    %v276 = vcvt.f32.s32 %v274
    %v277 = vshll.u32 %v276, 16
    %v278 = vadd.s32 %v277, %v275
    %v279 = vrot.slane %v278, 4
    %v280 = vadd.s32 %v278, %v279
    %v281 = vrot.slane %v280, 2
    %v282 = vadd.s32 %v280, %v281
    %v283 = vrot.slane %v282, 1
    %v284 = vadd.s32 %v282, %v283
    %s285 = vtos %v284
    %v286 = vsel %vm253, 1, 0
    %v288 = vunpack.c.l.s4 1983009808
    %v289 = vunpack.c.0.s8 %v288
    %v290 = vlaneseq
    %v291 = vshrl.u32 %v290, 7
    %v292 = vsub.s32 %v289, %v291
    %v293 = vrot.slane %v286, %v292
    %v294 = vcombine.high %v293, %v293
    %v295 = vsel %vm263, %v293, 0
    %v296 = vsel %vm263, %v294, 0
    %v297 = vadd.s32 %v295, %v296
    %v298 = vand.u32 %v297, 65535
    %v299 = vshrl.u32 %v297, 16
    %v300 = vcvt.s32.f32 %v298
    %v301 = vcvt.s32.f32 %v299
    %302 = vadd.xlane.f32.xlu0 %v300
    %v303 = vpop.xlane.xlu0 %302
    %304 = vadd.xlane.f32.xlu0 %v301
    %v305 = vpop.xlane.xlu0 %304
    %v306 = vcvt.f32.s32 %v303
    %v307 = vcvt.f32.s32 %v305
    %v308 = vshll.u32 %v307, 16
    %v309 = vadd.s32 %v308, %v306
    %v310 = vrot.slane %v309, 4
    %v311 = vadd.s32 %v309, %v310
    %v312 = vrot.slane %v311, 2
    %v313 = vadd.s32 %v311, %v312
    %v314 = vrot.slane %v313, 1
    %v315 = vadd.s32 %v313, %v314
    %s316 = vtos %v315
    %v317 = vlaneseq
    %v318 = vand.u32 %v317, 127
    %vm319 = vcmp.eq.s32.totalorder %v143, 0
    %vm320 = vcmp.eq.s32.totalorder %v318, 0
    %vm321 = vmand %vm319, %vm320
    %v322 = vstv %s316
    %v323 = vsel %vm321, %v322, 0
    %324 = vst [vmem:[#allocation8] sm:$0xff] %v323
    %v325 = vstv %s285
    %v326 = vsel %vm321, %v325, 0
    %327 = vst [vmem:[#allocation10] sm:$0xff] %v326
    // Predicated region
    $region18: #{tpu_custom_call.1} parent=1 // pred_check
      _
    $region19: #{tpu_custom_call.1} parent=1 // pred_check_branch
      %329 = sbr.rel (0) target = $region21
    $region20: #{tpu_custom_call.1} parent=1 // pred_region
      %s331 = ssub.s32 64, 64
      %332 = vsyncadd [#allocation4], %s331
      %s334 = sshll.u32 [#allocation7], 4
      %s335 = int_to_ptr.vmem [resolvable:$true] %s334
      %337 = dma.vmem_to_hbm [thread:$0]  %s335, 64, %s2, [#allocation4]
    $region21: #{tpu_custom_call.1} parent=1 // pred_fallthru
      _
    // Predicated region
    $region22: #{tpu_custom_call.1} parent=1 // pred_check
      _
    $region23: #{tpu_custom_call.1} parent=1 // pred_check_branch
      %339 = sbr.rel (0) target = $region25
    $region24: #{tpu_custom_call.1} parent=1 // pred_region
      %s341 = ssub.s32 128, 128
      %342 = vsyncadd [#allocation9], %s341
      %s344 = sshll.u32 [#allocation8], 4
      %s345 = int_to_ptr.vmem [resolvable:$true] %s344
      %347 = dma.vmem_to_hbm [thread:$0]  %s345, 128, %s3, [#allocation9]
    $region25: #{tpu_custom_call.1} parent=1 // pred_fallthru
      _
    // Predicated region
    $region26: #{tpu_custom_call.1} parent=1 // pred_check
      _
    $region27: #{tpu_custom_call.1} parent=1 // pred_check_branch
      %349 = sbr.rel (0) target = $region29
    $region28: #{tpu_custom_call.1} parent=1 // pred_region
      %s351 = ssub.s32 128, 128
      %352 = vsyncadd [#allocation9], %s351
      %s354 = sshll.u32 [#allocation10], 4
      %s355 = int_to_ptr.vmem [resolvable:$true] %s354
      %357 = dma.vmem_to_hbm [thread:$0]  %s355, 128, %s4, [#allocation9]
    $region29: #{tpu_custom_call.1} parent=1 // pred_fallthru
      _
    // Predicated region
    $region30: #{tpu_custom_call.1} parent=1 // pred_check
      _
    $region31: #{tpu_custom_call.1} parent=1 // pred_check_branch
      %359 = sbr.rel (0) target = $region33
    $region32: #{tpu_custom_call.1} parent=1 // pred_region
      %360 = dma.done [#allocation4], 64
    $region33: #{tpu_custom_call.1} parent=1 // pred_fallthru
      _
    // Predicated region
    $region34: #{tpu_custom_call.1} parent=1 // pred_check
      _
    $region35: #{tpu_custom_call.1} parent=1 // pred_check_branch
      %362 = sbr.rel (0) target = $region37
    $region36: #{tpu_custom_call.1} parent=1 // pred_region
      %363 = dma.done [#allocation9], 128
    $region37: #{tpu_custom_call.1} parent=1 // pred_fallthru
      _
    // Predicated region
    $region38: #{tpu_custom_call.1} parent=1 // pred_check
      _
    $region39: #{tpu_custom_call.1} parent=1 // pred_check_branch
      %365 = sbr.rel (0) target = $region41
    $region40: #{tpu_custom_call.1} parent=1 // pred_region
      %366 = dma.done [#allocation9], 128
    $region41: #{tpu_custom_call.1} parent=1 // pred_fallthru
      _
    %367 = vsyncpa [#allocation3], 1
    %368 = vsyncpa [#allocation6], 1
    %369 = vsyncpa [#allocation4], 1
    %370 = vsyncpa [#allocation9], 1

</llo_original>
